<compile_context>
chip_gen: v7x
topology: tpu7x:2x2x1
jax: 0.10.0
libtpu: 0.0.40
codegen_flags: <defaults>
</compile_context>

<pallas_src>
import jax
import jax.numpy as jnp
from jax.experimental import pallas as pl
from jax.experimental.pallas import tpu as pltpu


def _round_up(n, m):
    return ((n + m - 1) // m) * m


def _make_net_kernel(n_chunks, chunk):
    """Kernel over one (4, tile_b) x-tile, computed in `chunk`-column pieces."""

    def _net_kernel(x_ref, w1_ref, b1_ref, w2_ref, b2_ref, o_ref):
        # Feature-major layout:
        #   x:  [4,  TB]    w1: [10, 4]   b1: [10, 1]
        #   w2: [3, 10]     b2: [3, 1]    out: [3, TB]
        w1 = w1_ref[...]
        b1 = b1_ref[...]
        w2 = w2_ref[...]
        b2 = b2_ref[...]

        # Static-offset chunks: intermediates ([10, chunk], [3, chunk]) stay
        # small, so tile_b can be large purely for DMA amortization.
        for c in range(n_chunks):
            lo = c * chunk
            x = x_ref[:, lo:lo + chunk]

            # fc1 + ReLU (MXU contraction, K=4)
            h = jnp.dot(w1, x, preferred_element_type=jnp.float32) + b1
            h = jnp.maximum(h, 0.0)

            # dropout: identity in inference mode.
            # TODO(synk): stochastic training-mode dropout (p=0.5) via pltpu.prng_*.

            # fc2 -> logits [3, chunk]
            logits = jnp.dot(w2, h, preferred_element_type=jnp.float32) + b2

            # log_softmax over the 3-row feature (sublane) axis: explicit
            # 3-way unroll, stays on VPU/EUP, keeps the XLU slot free.
            r0 = logits[0:1, :]
            r1 = logits[1:2, :]
            r2 = logits[2:3, :]
            m = jnp.maximum(jnp.maximum(r0, r1), r2)
            lse = m + jnp.log(jnp.exp(r0 - m) + jnp.exp(r1 - m) + jnp.exp(r2 - m))
            o_ref[:, lo:lo + chunk] = logits - lse

    return _net_kernel


def net_forward(x, w1, b1, w2, b2, *, tile_b=131072, chunk=8192,
                transpose_output=True):
    """x: [..., 4]. Weights in PyTorch layout: w1 [10,4], b1 [10], w2 [3,10], b2 [3].

    Returns log-probabilities, shape [B, 3] (float32). Pass
    transpose_output=False to get the lane-dense [3, B] slab and skip the
    final XLA transpose pass (for consumers that accept feature-major).
    """
    x = x.reshape(-1, 4).astype(jnp.float32)      # the (effective) x.view(-1, 4)
    B = x.shape[0]

    # Pad batch only to a multiple of 128 (lane width); no tile_b-sized pad.
    B_pad = _round_up(B, 128)
    x_t = x.T                                      # [4, B] feature-major (layout plumbing)
    if B_pad != B:
        x_t = jnp.pad(x_t, ((0, 0), (0, B_pad - B)))

    # Tile sizing: cap at the (padded) batch, keep a multiple of the chunk so
    # static in-kernel slices line up; partial final grid block is clipped by
    # Pallas (masked writeback), so B need not be a multiple of tile_b.
    tile_b = max(128, min(tile_b, B_pad))
    if tile_b > chunk:
        tile_b = (tile_b // chunk) * chunk
        chunk_eff = chunk
    else:
        chunk_eff = tile_b
    n_chunks = tile_b // chunk_eff

    w1_k = w1.astype(jnp.float32)                 # [10, 4]
    w2_k = w2.astype(jnp.float32)                 # [3, 10]
    b1_k = b1.reshape(-1, 1).astype(jnp.float32)  # [10, 1]
    b2_k = b2.reshape(-1, 1).astype(jnp.float32)  # [3, 1]

    grid = (pl.cdiv(B_pad, tile_b),)
    out_t = pl.pallas_call(
        _make_net_kernel(n_chunks, chunk_eff),
        out_shape=jax.ShapeDtypeStruct((3, B_pad), jnp.float32),
        grid=grid,
        in_specs=[
            pl.BlockSpec((4, tile_b), lambda i: (0, i)),   # streamed x tiles
            pl.BlockSpec((10, 4), lambda i: (0, 0)),       # resident params
            pl.BlockSpec((10, 1), lambda i: (0, 0)),
            pl.BlockSpec((3, 10), lambda i: (0, 0)),
            pl.BlockSpec((3, 1), lambda i: (0, 0)),
        ],
        out_specs=pl.BlockSpec((3, tile_b), lambda i: (0, i)),
        compiler_params=pltpu.CompilerParams(
            dimension_semantics=("parallel",),
            vmem_limit_bytes=32 * 1024 * 1024,   # above v5e's 16 MiB default
        ),
    )(x_t, w1_k, b1_k, w2_k, b2_k)

    out = out_t[:, :B]
    if transpose_output:
        out = out.T                                # back to [B, 3]
    return out


def _reference(x, w1, b1, w2, b2):
    h = jnp.maximum(x @ w1.T + b1, 0.0)
    logits = h @ w2.T + b2
    return jax.nn.log_softmax(logits, axis=-1)


if __name__ == "__main__":
    key = jax.random.PRNGKey(0)
    kx, k1, k2, k3, k4 = jax.random.split(key, 5)

    B = 8
    x = jax.random.normal(kx, (B, 4), dtype=jnp.float32)

    # Deterministic parameter init (PyTorch Linear shapes: weight [out, in], bias [out]).
    w1 = jax.random.uniform(k1, (10, 4), minval=-0.5, maxval=0.5, dtype=jnp.float32)
    b1 = jax.random.uniform(k2, (10,), minval=-0.5, maxval=0.5, dtype=jnp.float32)
    w2 = jax.random.uniform(k3, (3, 10), minval=-0.3, maxval=0.3, dtype=jnp.float32)
    b2 = jax.random.uniform(k4, (3,), minval=-0.3, maxval=0.3, dtype=jnp.float32)

    out = net_forward(x, w1, b1, w2, b2)
    out = jax.block_until_ready(out)

    ref = _reference(x, w1, b1, w2, b2)
    assert out.shape == (B, 3), out.shape
    assert jnp.allclose(out, ref, atol=1e-5, rtol=1e-5), "mismatch vs reference"

    print("KERNEL_OK")
</pallas_src>

<mosaic_0001>
module attributes {stable_mosaic.version = 11 : i64} {
  func.func @_net_kernel(%arg0: i32, %arg1: memref<4x128xf32, #tpu.memory_space<vmem>>, %arg2: memref<10x4xf32, #tpu.memory_space<vmem>>, %arg3: memref<10x1xf32, #tpu.memory_space<vmem>>, %arg4: memref<3x10xf32, #tpu.memory_space<vmem>>, %arg5: memref<3x1xf32, #tpu.memory_space<vmem>>, %arg6: memref<3x128xf32, #tpu.memory_space<vmem>>) attributes {dimension_semantics = [#tpu.dimension_semantics<parallel>], iteration_bounds = array<i64: 1>, scalar_prefetch = 0 : i64, scratch_operands = 0 : i64, tpu.core_type = #tpu.core_type<tc>, window_params = [{transform_indices = @transform_0, window_bounds = array<i64: 4, 128>}, {pipeline_mode = #tpu.pipeline_mode<synchronous>, transform_indices = @transform_1, window_bounds = array<i64: 10, 4>}, {pipeline_mode = #tpu.pipeline_mode<synchronous>, transform_indices = @transform_2, window_bounds = array<i64: 10, 1>}, {pipeline_mode = #tpu.pipeline_mode<synchronous>, transform_indices = @transform_3, window_bounds = array<i64: 3, 10>}, {pipeline_mode = #tpu.pipeline_mode<synchronous>, transform_indices = @transform_4, window_bounds = array<i64: 3, 1>}, {transform_indices = @transform_5, window_bounds = array<i64: 3, 128>}]} {
    %c0 = arith.constant 0 : index
    %c0_0 = arith.constant 0 : index
    %0 = vector.load %arg2[%c0, %c0_0] : memref<10x4xf32, #tpu.memory_space<vmem>>, vector<10x4xf32>
    %c0_1 = arith.constant 0 : index
    %c0_2 = arith.constant 0 : index
    %1 = vector.load %arg3[%c0_1, %c0_2] : memref<10x1xf32, #tpu.memory_space<vmem>>, vector<10x1xf32>
    %c0_3 = arith.constant 0 : index
    %c0_4 = arith.constant 0 : index
    %2 = vector.load %arg4[%c0_3, %c0_4] : memref<3x10xf32, #tpu.memory_space<vmem>>, vector<3x10xf32>
    %c0_5 = arith.constant 0 : index
    %c0_6 = arith.constant 0 : index
    %3 = vector.load %arg5[%c0_5, %c0_6] : memref<3x1xf32, #tpu.memory_space<vmem>>, vector<3x1xf32>
    %c0_7 = arith.constant 0 : index
    %c0_8 = arith.constant 0 : index
    %4 = vector.load %arg1[%c0_7, %c0_8] : memref<4x128xf32, #tpu.memory_space<vmem>>, vector<4x128xf32>
    %cst = arith.constant dense<0.000000e+00> : vector<10x128xf32>
    %5 = tpu.matmul %0, %4, %cst {dimension_numbers = #tpu.dot_dimension_numbers<[1], [0], [0], [1], [0, 0, 1, 1], [], []>} : vector<10x4xf32>, vector<4x128xf32>, vector<10x128xf32> -> vector<10x128xf32>
    %6 = vector.broadcast %1 : vector<10x1xf32> to vector<10x128xf32>
    %7 = arith.addf %5, %6 : vector<10x128xf32>
    %cst_9 = arith.constant 0.000000e+00 : f32
    %8 = vector.broadcast %cst_9 : f32 to vector<10x128xf32>
    %9 = arith.maximumf %7, %8 : vector<10x128xf32>
    %cst_10 = arith.constant dense<0.000000e+00> : vector<3x128xf32>
    %10 = tpu.matmul %2, %9, %cst_10 {dimension_numbers = #tpu.dot_dimension_numbers<[1], [0], [0], [1], [0, 0, 1, 1], [], []>} : vector<3x10xf32>, vector<10x128xf32>, vector<3x128xf32> -> vector<3x128xf32>
    %11 = vector.broadcast %3 : vector<3x1xf32> to vector<3x128xf32>
    %12 = arith.addf %10, %11 : vector<3x128xf32>
    %13 = vector.extract_strided_slice %12 {offsets = [0, 0], sizes = [1, 128], strides = [1, 1]} : vector<3x128xf32> to vector<1x128xf32>
    %14 = vector.extract_strided_slice %12 {offsets = [1, 0], sizes = [1, 128], strides = [1, 1]} : vector<3x128xf32> to vector<1x128xf32>
    %15 = vector.extract_strided_slice %12 {offsets = [2, 0], sizes = [1, 128], strides = [1, 1]} : vector<3x128xf32> to vector<1x128xf32>
    %16 = arith.maximumf %13, %14 : vector<1x128xf32>
    %17 = arith.maximumf %16, %15 : vector<1x128xf32>
    %18 = arith.subf %13, %17 : vector<1x128xf32>
    %19 = math.exp %18 : vector<1x128xf32>
    %20 = arith.subf %14, %17 : vector<1x128xf32>
    %21 = math.exp %20 : vector<1x128xf32>
    %22 = arith.addf %19, %21 : vector<1x128xf32>
    %23 = arith.subf %15, %17 : vector<1x128xf32>
    %24 = math.exp %23 : vector<1x128xf32>
    %25 = arith.addf %22, %24 : vector<1x128xf32>
    %26 = math.log %25 : vector<1x128xf32>
    %27 = arith.addf %17, %26 : vector<1x128xf32>
    %28 = vector.broadcast %27 : vector<1x128xf32> to vector<3x128xf32>
    %29 = arith.subf %12, %28 : vector<3x128xf32>
    %c0_11 = arith.constant 0 : index
    %c0_12 = arith.constant 0 : index
    %30 = vector.load %arg6[%c0_11, %c0_12] : memref<3x128xf32, #tpu.memory_space<vmem>>, vector<3x128xf32>
    tpu.vector_store %arg6[%c0_11, %c0_12], %29 {strides = array<i32>} : memref<3x128xf32, #tpu.memory_space<vmem>>, vector<3x128xf32>,
    return
  }
  func.func @transform_0(%arg0: i32) -> (i32, i32) {
    %c0_i32 = arith.constant 0 : i32
    %c0_i32_0 = arith.constant 0 : i32
    return %c0_i32, %arg0 : i32, i32
  }
  func.func @transform_1(%arg0: i32) -> (i32, i32) {
    %c0_i32 = arith.constant 0 : i32
    %c0_i32_0 = arith.constant 0 : i32
    %c0_i32_1 = arith.constant 0 : i32
    return %c0_i32, %c0_i32_0 : i32, i32
  }
  func.func @transform_2(%arg0: i32) -> (i32, i32) {
    %c0_i32 = arith.constant 0 : i32
    %c0_i32_0 = arith.constant 0 : i32
    %c0_i32_1 = arith.constant 0 : i32
    return %c0_i32, %c0_i32_0 : i32, i32
  }
  func.func @transform_3(%arg0: i32) -> (i32, i32) {
    %c0_i32 = arith.constant 0 : i32
    %c0_i32_0 = arith.constant 0 : i32
    %c0_i32_1 = arith.constant 0 : i32
    return %c0_i32, %c0_i32_0 : i32, i32
  }
  func.func @transform_4(%arg0: i32) -> (i32, i32) {
    %c0_i32 = arith.constant 0 : i32
    %c0_i32_0 = arith.constant 0 : i32
    %c0_i32_1 = arith.constant 0 : i32
    return %c0_i32, %c0_i32_0 : i32, i32
  }
  func.func @transform_5(%arg0: i32) -> (i32, i32) {
    %c0_i32 = arith.constant 0 : i32
    %c0_i32_0 = arith.constant 0 : i32
    return %c0_i32, %arg0 : i32, i32
  }
}

</mosaic_0001>

<llo_original>
// kernel: tpu_custom_call.1
$region0: #{tpu_custom_call.1}
  #allocation0 [shape = 'u32[]', space=smem, size = 0x4, offset = 0x4, fixed_abs, tag = 'smem constant byte address 0x4 - core index']
  #allocation1 [shape = 'u32[144,128]{1,0:T(1,128)}', space=vmem, size = 0x12000, scoped, tag = 'internal scratch']
  %s0 = inlined_call_operand.vmem [shape: f32[4,128], index: 0, kind: input, shape index: {}]
  %s1 = inlined_call_operand.vmem [shape: f32[10,4], index: 1, kind: input, shape index: {}]
  %s2 = inlined_call_operand.vmem [shape: f32[10,1], index: 2, kind: input, shape index: {}]
  %s3 = inlined_call_operand.vmem [shape: f32[3,10], index: 3, kind: input, shape index: {}]
  %s4 = inlined_call_operand.vmem [shape: f32[3,1], index: 4, kind: input, shape index: {}]
  %s5 = inlined_call_operand.hbm [shape: f32[3,128], index: 5, kind: output, shape index: {}]
  %s6 = sld [smem:[#allocation0]]
  $region30: #{tpu_custom_call.1} parent=0
    _
  %s8 = ssub.s32 1, %s6
  %s9 = scalar_select 0, %s8, %s6
  $region1: #{tpu_custom_call.1} parent=0
    #allocation2 [shape = 'u8[2048]{0}', space=vmem, size = 0x800, scoped, tag = 'output window, operand 0, single buffered']
    #allocation3 [shape = 's32[1]{0}', space=sflag, size = 0x4, scoped, tag = 'scoped memory for tpu_custom_call.1']
    %10 = vsyncpa [#allocation3], 0
    // Predicated region
    $region2: #{tpu_custom_call.1} parent=1 // pred_check
      _
    $region3: #{tpu_custom_call.1} parent=1 // pred_check_branch
      %12 = sbr.rel (0) target = $region5
    $region4: #{tpu_custom_call.1} parent=1 // pred_region
      _
    $region5: #{tpu_custom_call.1} parent=1 // pred_fallthru
      _
    // Predicated region
    $region6: #{tpu_custom_call.1} parent=1 // pred_check
      _
    $region7: #{tpu_custom_call.1} parent=1 // pred_check_branch
      %14 = sbr.rel (0) target = $region9
    $region8: #{tpu_custom_call.1} parent=1 // pred_region
      _
    $region9: #{tpu_custom_call.1} parent=1 // pred_fallthru
      _
    // Predicated region
    $region10: #{tpu_custom_call.1} parent=1 // pred_check
      _
    $region11: #{tpu_custom_call.1} parent=1 // pred_check_branch
      %16 = sbr.rel (0) target = $region13
    $region12: #{tpu_custom_call.1} parent=1 // pred_region
      _
    $region13: #{tpu_custom_call.1} parent=1 // pred_fallthru
      _
    // Predicated region
    $region14: #{tpu_custom_call.1} parent=1 // pred_check
      _
    $region15: #{tpu_custom_call.1} parent=1 // pred_check_branch
      %18 = sbr.rel (0) target = $region17
    $region16: #{tpu_custom_call.1} parent=1 // pred_region
      _
    $region17: #{tpu_custom_call.1} parent=1 // pred_fallthru
      _
    // Predicated region
    $region18: #{tpu_custom_call.1} parent=1 // pred_check
      _
    $region19: #{tpu_custom_call.1} parent=1 // pred_check_branch
      %20 = sbr.rel (0) target = $region21
    $region20: #{tpu_custom_call.1} parent=1 // pred_region
      _
    $region21: #{tpu_custom_call.1} parent=1 // pred_fallthru
      _
    %v21 = vld [vmem:[%s1] sm:$0xff]
    %v22 = vld [vmem:[%s1 + $0x8] sm:$0x3]
    %v23 = vld [vmem:[%s2] sm:$0xff]
    %v24 = vld [vmem:[%s2 + $0x8] sm:$0x3]
    %v25 = vld [vmem:[%s3] sm:$0x7]
    %v26 = vld [vmem:[%s4] sm:$0x7]
    %v27 = vld [vmem:[%s0] sm:$0xf]
    %29 = vset.pattern.permute.xlu0 0
    %30 = vperm.xlu0 %29, %v23
    %v31 = vpop.permute.xlu0 %30
    %34 = vset.pattern.permute.xlu0 0
    %35 = vperm.xlu0 %34, %v24
    %v36 = vpop.permute.xlu0 %35
    %vm38 = vcmask 31744
    %v40 = vsel %vm38, %v21, 0
    %v43 = vsel %vm38, %v22, 0
    %vm45 = vcmask 1043456
    %v47 = vsel %vm45, %v27, 0
    %49 = vmatprep.subr.mxu0 0.0
    %50 = vmatpush1.msra.mxu0 %v47
    %51 = vmatprep.subr.mxu0 0.0
    %52 = vmatpush1.msra.mxu0 0.0
    %53 = vmatprep.subr.mxu0 0.0
    %54 = vmatpush1.msra.mxu0 0.0
    %55 = vmatprep.subr.mxu0 0.0
    %56 = vmatpush1.msra.mxu0 0.0
    %57 = vmatprep.subr.mxu0 0.0
    %58 = vmatpush1.msra.mxu0 0.0
    %59 = vmatprep.subr.mxu0 0.0
    %60 = vmatpush1.msra.mxu0 0.0
    %61 = vmatprep.subr.mxu0 0.0
    %62 = vmatpush1.msra.mxu0 0.0
    %63 = vmatprep.subr.mxu0 0.0
    %64 = vmatpush1.msra.mxu0 0.0
    %65 = vmatprep.subr.mxu0 0.0
    %66 = vmatpush1.msra.mxu0 0.0
    %67 = vmatprep.subr.mxu0 0.0
    %68 = vmatpush1.msra.mxu0 0.0
    %69 = vmatprep.subr.mxu0 0.0
    %70 = vmatpush1.msra.mxu0 0.0
    %71 = vmatprep.subr.mxu0 0.0
    %72 = vmatpush1.msra.mxu0 0.0
    %73 = vmatprep.subr.mxu0 0.0
    %74 = vmatpush1.msra.mxu0 0.0
    %75 = vmatprep.subr.mxu0 0.0
    %76 = vmatpush1.msra.mxu0 0.0
    %77 = vmatprep.subr.mxu0 0.0
    %78 = vmatpush1.msra.mxu0 0.0
    %79 = vmatprep.subr.mxu0 0.0
    %80 = vmatpush1.msra.mxu0 0.0
    %81 = vmatprep.subr.mxu0 0.0
    %82 = vmatpush1.msra.mxu0 0.0
    %83 = vmatprep.subr.mxu0 0.0
    %84 = vmatpush1.msra.mxu0 0.0
    %85 = vmatprep.subr.mxu0 0.0
    %86 = vmatpush1.msra.mxu0 0.0
    %87 = vmatprep.subr.mxu0 0.0
    %88 = vmatpush1.msra.mxu0 0.0
    %89 = vmatprep.subr.mxu0 0.0
    %90 = vmatpush1.msra.mxu0 0.0
    %91 = vmatprep.subr.mxu0 0.0
    %92 = vmatpush1.msra.mxu0 0.0
    %93 = vmatprep.subr.mxu0 0.0
    %94 = vmatpush1.msra.mxu0 0.0
    %95 = vmatprep.subr.mxu0 0.0
    %96 = vmatpush1.msra.mxu0 0.0
    %97 = vmatprep.subr.mxu0 0.0
    %98 = vmatpush1.msra.mxu0 0.0
    %99 = vmatprep.subr.mxu0 0.0
    %100 = vmatpush1.msra.mxu0 0.0
    %101 = vmatprep.subr.mxu0 0.0
    %102 = vmatpush1.msra.mxu0 0.0
    %103 = vmatprep.subr.mxu0 0.0
    %104 = vmatpush1.msra.mxu0 0.0
    %105 = vmatprep.subr.mxu0 0.0
    %106 = vmatpush1.msra.mxu0 0.0
    %107 = vmatprep.subr.mxu0 0.0
    %108 = vmatpush1.msra.mxu0 0.0
    %109 = vmatprep.subr.mxu0 0.0
    %110 = vmatpush1.msra.mxu0 0.0
    %111 = vmatprep.subr.mxu0 0.0
    %112 = vmatpush1.msra.mxu0 0.0
    %113 = vmatprep.mubr.f32.mxu0 0.0
    %114 = vmatmul.mubr.f32.gmra.mrb[0].mxu0 %v40
    %v115 = vpop.f32.mrb[0].mxu0
    %v116 = vadd.f32 %v31, %v115
    %v117 = vpop.f32.mrb[0].mxu0
    %118 = vmatprep.mubr.f32.mxu0 0.0
    %119 = vmatmul.mubr.f32.gmra.mrb[0].mxu0 %v43
    %v120 = vpop.f32.mrb[0].mxu0
    %v121 = vadd.f32 %v36, %v120
    %v122 = vpop.f32.mrb[0].mxu0
    %123 = vdwg.mxu0
    %v124 = vmax.f32 %v116, 0.0
    %v125 = vmax.f32 %v121, 0.0
    %127 = vset.pattern.permute.xlu0 0
    %128 = vperm.xlu0 %127, %v26
    %v129 = vpop.permute.xlu0 %128
    %vm131 = vcmask 80896
    %v133 = vsel %vm131, %v25, 0
    %vm135 = vcmask 1041408
    %v137 = vsel %vm135, %v125, 0
    %139 = vmatprep.subr.mxu0 0.0
    %140 = vmatpush1.msra.mxu0 %v124
    %141 = vmatprep.subr.mxu0 0.0
    %142 = vmatpush1.msra.mxu0 %v137
    %143 = vmatprep.subr.mxu0 0.0
    %144 = vmatpush1.msra.mxu0 0.0
    %145 = vmatprep.subr.mxu0 0.0
    %146 = vmatpush1.msra.mxu0 0.0
    %147 = vmatprep.subr.mxu0 0.0
    %148 = vmatpush1.msra.mxu0 0.0
    %149 = vmatprep.subr.mxu0 0.0
    %150 = vmatpush1.msra.mxu0 0.0
    %151 = vmatprep.subr.mxu0 0.0
    %152 = vmatpush1.msra.mxu0 0.0
    %153 = vmatprep.subr.mxu0 0.0
    %154 = vmatpush1.msra.mxu0 0.0
    %155 = vmatprep.subr.mxu0 0.0
    %156 = vmatpush1.msra.mxu0 0.0
    %157 = vmatprep.subr.mxu0 0.0
    %158 = vmatpush1.msra.mxu0 0.0
    %159 = vmatprep.subr.mxu0 0.0
    %160 = vmatpush1.msra.mxu0 0.0
    %161 = vmatprep.subr.mxu0 0.0
    %162 = vmatpush1.msra.mxu0 0.0
    %163 = vmatprep.subr.mxu0 0.0
    %164 = vmatpush1.msra.mxu0 0.0
    %165 = vmatprep.subr.mxu0 0.0
    %166 = vmatpush1.msra.mxu0 0.0
    %167 = vmatprep.subr.mxu0 0.0
    %168 = vmatpush1.msra.mxu0 0.0
    %169 = vmatprep.subr.mxu0 0.0
    %170 = vmatpush1.msra.mxu0 0.0
    %171 = vmatprep.subr.mxu0 0.0
    %172 = vmatpush1.msra.mxu0 0.0
    %173 = vmatprep.subr.mxu0 0.0
    %174 = vmatpush1.msra.mxu0 0.0
    %175 = vmatprep.subr.mxu0 0.0
    %176 = vmatpush1.msra.mxu0 0.0
    %177 = vmatprep.subr.mxu0 0.0
    %178 = vmatpush1.msra.mxu0 0.0
    %179 = vmatprep.subr.mxu0 0.0
    %180 = vmatpush1.msra.mxu0 0.0
    %181 = vmatprep.subr.mxu0 0.0
    %182 = vmatpush1.msra.mxu0 0.0
    %183 = vmatprep.subr.mxu0 0.0
    %184 = vmatpush1.msra.mxu0 0.0
    %185 = vmatprep.subr.mxu0 0.0
    %186 = vmatpush1.msra.mxu0 0.0
    %187 = vmatprep.subr.mxu0 0.0
    %188 = vmatpush1.msra.mxu0 0.0
    %189 = vmatprep.subr.mxu0 0.0
    %190 = vmatpush1.msra.mxu0 0.0
    %191 = vmatprep.subr.mxu0 0.0
    %192 = vmatpush1.msra.mxu0 0.0
    %193 = vmatprep.subr.mxu0 0.0
    %194 = vmatpush1.msra.mxu0 0.0
    %195 = vmatprep.subr.mxu0 0.0
    %196 = vmatpush1.msra.mxu0 0.0
    %197 = vmatprep.subr.mxu0 0.0
    %198 = vmatpush1.msra.mxu0 0.0
    %199 = vmatprep.subr.mxu0 0.0
    %200 = vmatpush1.msra.mxu0 0.0
    %201 = vmatprep.subr.mxu0 0.0
    %202 = vmatpush1.msra.mxu0 0.0
    %203 = vmatprep.mubr.f32.mxu0 0.0
    %204 = vmatmul.mubr.f32.gmra.mrb[0].mxu0 %v133
    %v205 = vpop.f32.mrb[0].mxu0
    %v206 = vadd.f32 %v129, %v205
    %v207 = vpop.f32.mrb[0].mxu0
    %208 = vdwg.mxu0
    %v210 = vrot.slane %v206, 1
    %v212 = vmax.f32 %v206, %v210
    %v213 = vrot.slane %v206, 2
    %v215 = vmax.f32 %v212, %v213
    %v216 = vsub.f32 %v206, %v215
    %v217 = vmul.f32 %v216, 1.442695
    %v218 = vpow.pop %v217
    %v220 = vrot.slane %v215, 7
    %v222 = vsub.f32 %v206, %v220
    %v223 = vmul.f32 %v222, 1.442695
    %v224 = vpow.pop %v223
    %v226 = vrot.slane %v224, 1
    %v228 = vadd.f32 %v218, %v226
    %v229 = vrot.slane %v215, 6
    %v231 = vsub.f32 %v206, %v229
    %v232 = vmul.f32 %v231, 1.442695
    %v233 = vpow.pop %v232
    %v235 = vrot.slane %v233, 2
    %v237 = vadd.f32 %v228, %v235
    %v238 = vlog2.pop %v237
    %v239 = vmul.f32 %v238, 0.6931472
    %v240 = vadd.f32 %v215, %v239
    %v241 = vlaneseq
    %v242 = vshrl.u32 %v241, 7
    %v243 = vsub.s32 0, %v242
    %v244 = vrot.slane %v240, %v243
    %v245 = vsub.f32 %v206, %v244
    %246 = vst [vmem:[#allocation2] sm:$0x7] %v245
    // Predicated region
    $region22: #{tpu_custom_call.1} parent=1 // pred_check
      _
    $region23: #{tpu_custom_call.1} parent=1 // pred_check_branch
      %248 = sbr.rel (0) target = $region25
    $region24: #{tpu_custom_call.1} parent=1 // pred_region
      %s250 = ssub.s32 64, 64
      %251 = vsyncadd [#allocation3], %s250
      %s253 = sshll.u32 [#allocation2], 4
      %s254 = int_to_ptr.vmem [resolvable:$true] %s253
      %256 = dma.vmem_to_hbm [thread:$0]  %s254, 64, %s5, [#allocation3]
    $region25: #{tpu_custom_call.1} parent=1 // pred_fallthru
      _
    // Predicated region
    $region26: #{tpu_custom_call.1} parent=1 // pred_check
      _
    $region27: #{tpu_custom_call.1} parent=1 // pred_check_branch
      %258 = sbr.rel (0) target = $region29
    $region28: #{tpu_custom_call.1} parent=1 // pred_region
      %259 = dma.done [#allocation3], 64
    $region29: #{tpu_custom_call.1} parent=1 // pred_fallthru
      _
    %260 = vsyncpa [#allocation3], 1

</llo_original>
